<compile_context>
chip_gen: v7x
topology: tpu7x:2x2x1
jax: 0.10.0
libtpu: 0.0.40
codegen_flags: <defaults>
</compile_context>

<pallas_src>
import math

import jax
import jax.numpy as jnp
from jax import lax
from jax.experimental import pallas as pl
from jax.experimental.pallas import tpu as pltpu

PRIOR_PI = 0.5
PRIOR_S1 = 1.0
PRIOR_S2 = 0.002

_RNN_UNROLL = 8                      # bounded unroll for the serial recurrent loops
# Set to jnp.bfloat16 on v6e/v7x to halve bytes / double MXU throughput on the large hoisted
# matmul slabs (gi, gx, out_all, hid2, out_feat); f32 accumulation is kept either way.
_MATMUL_INPUT_DTYPE = jnp.float32


def _vmem_limit_bytes():
    # Generation-aware scoped-VMEM budget: bigger on 128-MiB parts (v5e/v6e), conservative
    # under v7x's 64-MiB per-TensorCore ceiling.
    cap = None
    try:
        info = pltpu.get_tpu_info()
        cap = getattr(info, 'vmem_capacity_bytes', None)
    except Exception:
        cap = None
    if not cap:
        return 32 * 1024 * 1024
    return int(min(max(cap // 2, 32 * 1024 * 1024), 64 * 1024 * 1024))


_VMEM_LIMIT = _vmem_limit_bytes()


def _round_up(x, m):
    return ((x + m - 1) // m) * m


# ----------------------------- Pallas kernels -----------------------------

def _apply_act(y, act):
    if act == 'relu':
        return jnp.maximum(y, 0.0)
    if act == 'sigmoid':
        return jax.nn.sigmoid(y)
    return y


def _make_linear_kernel(act):
    def kernel(x_ref, w_ref, b_ref, o_ref):
        y = jnp.dot(x_ref[...], w_ref[...],
                    preferred_element_type=jnp.float32) + b_ref[...]
        o_ref[...] = _apply_act(y, act)
    return kernel


def _linear2_kernel(x1_ref, x2_ref, w1_ref, w2_ref, b_ref, o_ref):
    # x1 @ w1 + x2 @ w2 + b  (fused split-input linear; avoids lane-concat glue slabs).
    o_ref[...] = (jnp.dot(x1_ref[...], w1_ref[...], preferred_element_type=jnp.float32)
                  + jnp.dot(x2_ref[...], w2_ref[...], preferred_element_type=jnp.float32)
                  + b_ref[...])


def _mlp2_kernel(x_ref, w1_ref, b1_ref, w2_ref, b2_ref, o_ref):
    # relu(x @ w1 + b1) @ w2 + b2, fused (no HBM round trip of the hidden).
    h = jnp.maximum(jnp.dot(x_ref[...], w1_ref[...],
                            preferred_element_type=jnp.float32) + b1_ref[...], 0.0)
    o_ref[...] = jnp.dot(h, w2_ref[...],
                         preferred_element_type=jnp.float32) + b2_ref[...]


def _masked_linear_relu_kernel(x_ref, m_ref, w_ref, b_ref, o_ref):
    # relu((x * m) @ w + b): masking fused so (feat_imp*masks) never hits HBM.
    o_ref[...] = jnp.maximum(
        jnp.dot(x_ref[...] * m_ref[...], w_ref[...],
                preferred_element_type=jnp.float32) + b_ref[...], 0.0)


def _relu_mlp_proj_kernel(x_ref, w1_ref, b1_ref, pj_ref, bl_ref, o_ref):
    # relu(x @ w1 + b1) @ proj + bl, fused (S-sample feature branch; z_s stays in VMEM).
    z = jnp.maximum(jnp.dot(x_ref[...], w1_ref[...],
                            preferred_element_type=jnp.float32) + b1_ref[...], 0.0)
    o_ref[...] = jnp.dot(z, pj_ref[...],
                         preferred_element_type=jnp.float32) + bl_ref[...]


def _feat_chain_kernel(x_ref, wm_ref, bm_ref, wb_ref, bb_ref, pj_ref, bl_ref, o_ref):
    # relu(x @ Wm + bm) -> relu(. @ blockdiag(W_bayes) + bb) -> . @ blockdiag(w_lin) + b_lin
    # TODO(synk): switch the block-diagonal Bayesian matmul to a dense (rows*V, FH)@(FH, FH)
    # form (w_fb1 is shared across the V blocks) once V*FH exceeds a couple of MXU tiles.
    h = jnp.maximum(jnp.dot(x_ref[...], wm_ref[...],
                            preferred_element_type=jnp.float32) + bm_ref[...], 0.0)
    z = jnp.maximum(jnp.dot(h, wb_ref[...],
                            preferred_element_type=jnp.float32) + bb_ref[...], 0.0)
    o_ref[...] = jnp.dot(z, pj_ref[...],
                         preferred_element_type=jnp.float32) + bl_ref[...]


def _decay_complement_kernel(deltas_ref, xprime_ref, nmeans_ref, masks_ref, nv_ref,
                             pad_ref, wdT_ref, bd_ref, gamma_ref, xcomp_ref):
    # Fused: gamma = exp(-relu(deltas @ Wd + b)); x_decay; x_complement (two outputs,
    # zero intermediate HBM slabs).
    g = jnp.exp(-jnp.maximum(
        jnp.dot(deltas_ref[...], wdT_ref[...],
                preferred_element_type=jnp.float32) + bd_ref[...], 0.0))
    x_decay = g * xprime_ref[...] + (1.0 - g) * nmeans_ref[...]
    m = masks_ref[...]
    gamma_ref[...] = g
    xcomp_ref[...] = (m * nv_ref[...] + (1.0 - m) * x_decay) * pad_ref[...]


def _fuse_impute_kernel(gamma_ref, masks_ref, feat_ref, rnn_ref, nv_ref,
                        wgT_ref, wmT_ref, bf_ref,
                        final_ref, fusion_ref, beta2_ref):
    # Fused: betas = sigmoid([gamma|masks] @ W_fuse^T + b) for both Bayesian fuse draws,
    # then imputation fusion and the final imputation, all in one pass.
    V = gamma_ref.shape[1]
    y = (jnp.dot(gamma_ref[...], wgT_ref[...], preferred_element_type=jnp.float32)
         + jnp.dot(masks_ref[...], wmT_ref[...], preferred_element_type=jnp.float32)
         + bf_ref[...])
    betas = jax.nn.sigmoid(y)
    beta = betas[:, :V]
    beta2 = betas[:, V:]
    m = masks_ref[...]
    imp_fusion = beta * feat_ref[...] + (1.0 - beta) * rnn_ref[...]
    final_ref[...] = m * nv_ref[...] + (1.0 - m) * imp_fusion
    fusion_ref[...] = imp_fusion
    beta2_ref[...] = beta2


def _gru_kernel(gi_ref, whh_ref, bhh_ref, mask_ref, hn_ref, h_sc, hn_sc):
    # gi_ref: (T, B, 3CH) precomputed x @ W_ih^T + b_ih  (hoisted out of the loop)
    # whh_ref: (CH, 3CH), bhh_ref: (1, 3CH), mask_ref: (T, B, 1)
    T = gi_ref.shape[0]
    CH = whh_ref.shape[0]
    h_sc[...] = jnp.zeros_like(h_sc)
    hn_sc[...] = jnp.zeros_like(hn_sc)

    def body(t, carry):
        h = h_sc[...]
        gi = gi_ref[t]
        gh = jnp.dot(h, whh_ref[...], preferred_element_type=jnp.float32) + bhh_ref[...]
        r = jax.nn.sigmoid(gi[:, 0 * CH:1 * CH] + gh[:, 0 * CH:1 * CH])
        z = jax.nn.sigmoid(gi[:, 1 * CH:2 * CH] + gh[:, 1 * CH:2 * CH])
        n = jnp.tanh(gi[:, 2 * CH:3 * CH] + r * gh[:, 2 * CH:3 * CH])
        h_new = (1.0 - z) * n + z * h
        m = mask_ref[t]                       # (B, 1) precomputed length mask
        h_sc[...] = h_new
        hn_sc[...] = m * h_new + (1.0 - m) * hn_sc[...]
        return carry

    lax.fori_loop(0, T, body, 0, unroll=min(_RNN_UNROLL, max(T, 1)))
    hn_ref[...] = hn_sc[...]


def _bilstm_kernel(gx_ref, ctx_ref, whh_ref, h0_ref, c0_ref, of_ref, ob_ref, h_sc, c_sc):
    # gx_ref: (T, B, 8H) hoisted per-step input projections (fwd|bwd), no bias.
    # ctx_ref: (B, 8H) context-vector projection + biases (constant over time, added in-VMEM).
    # whh_ref: (2H, 8H) block-diag of Wf_hh^T / Wb_hh^T -> one MXU op per step.
    # h0/c0: (B, 2H) = [forward | backward].  of/ob: (T, B, H) per-direction histories.
    T = gx_ref.shape[0]
    H = whh_ref.shape[0] // 2
    h_sc[...] = h0_ref[...]
    c_sc[...] = c0_ref[...]
    of_ref[0] = h0_ref[:, :H]
    ob_ref[T - 1] = h0_ref[:, H:]

    def body(t, carry):
        h = h_sc[...]
        g = jnp.dot(h, whh_ref[...], preferred_element_type=jnp.float32) + ctx_ref[...]
        gf = gx_ref[t][:, :4 * H] + g[:, :4 * H]
        gb = gx_ref[T - 1 - t][:, 4 * H:] + g[:, 4 * H:]

        def lstm_gates(gg, cc):
            i = jax.nn.sigmoid(gg[:, 0 * H:1 * H])
            f = jax.nn.sigmoid(gg[:, 1 * H:2 * H])
            u = jnp.tanh(gg[:, 2 * H:3 * H])
            o = jax.nn.sigmoid(gg[:, 3 * H:4 * H])
            c_new = f * cc + i * u
            return o * jnp.tanh(c_new), c_new

        hf, cf = lstm_gates(gf, c_sc[:, :H])
        hb, cb = lstm_gates(gb, c_sc[:, H:])
        h_sc[:, :H] = hf                       # no per-step lane-concat copies
        h_sc[:, H:] = hb
        c_sc[:, :H] = cf
        c_sc[:, H:] = cb
        of_ref[t + 1] = hf
        ob_ref[T - 2 - t] = hb
        return carry

    lax.fori_loop(0, T - 1, body, 0, unroll=min(_RNN_UNROLL, max(T - 1, 1)))


# --------------------------- pallas_call wrappers ---------------------------

def _pick_block_m(M, row_bytes, const_bytes):
    """VMEM-budget derived row tile; None => whole slab (small inputs)."""
    if M <= 512:
        return None
    avail = _VMEM_LIMIT - 2 * const_bytes - (2 << 20)      # consts are double-buffered
    if avail <= 0:
        return None
    bm = (avail // (2 * max(row_bytes, 1))) // 128 * 128   # double-buffered row streams
    bm = int(min(bm, 1024))
    if bm < 128:
        bm = 128
    if bm >= M:
        return None
    return bm


def _rowwise_call(kernel, row_inputs, consts, out_widths, hidden_width=0,
                  in_dtype=jnp.float32):
    """Call `kernel(row_refs..., const_refs..., out_refs...)` with rows tiled over a
    pl.cdiv grid (ragged last block OK: kernels are row-wise maps) and every const
    (weights/biases) fully resident.  Outputs are (M, n) f32 slabs."""
    row_inputs = [x.astype(in_dtype) for x in row_inputs]
    consts = [c.astype(in_dtype) for c in consts]
    M = row_inputs[0].shape[0]
    n_out = list(out_widths)
    single = len(n_out) == 1
    out_shape = tuple(jax.ShapeDtypeStruct((M, n), jnp.float32) for n in n_out)
    row_width = sum(int(x.shape[-1]) for x in row_inputs) + sum(n_out) + hidden_width
    const_bytes = sum(4 * int(c.size) for c in consts)
    bm = _pick_block_m(M, 4 * row_width, const_bytes)
    if bm is None:
        return pl.pallas_call(
            kernel,
            out_shape=out_shape[0] if single else out_shape,
            compiler_params=pltpu.CompilerParams(vmem_limit_bytes=_VMEM_LIMIT),
        )(*row_inputs, *consts)
    in_specs = []
    for x in row_inputs:
        in_specs.append(pl.BlockSpec((bm, x.shape[1]), lambda i: (i, 0)))
    for c in consts:
        # NOTE: pipeline_mode=pl.Buffered(1) on these invariant consts would halve their
        # VMEM footprint on v7x; kept default for broad Pallas-version compatibility.
        zeros = (0,) * c.ndim
        in_specs.append(pl.BlockSpec(c.shape, lambda i, _z=zeros: _z))
    out_specs = tuple(pl.BlockSpec((bm, n), lambda i: (i, 0)) for n in n_out)
    return pl.pallas_call(
        kernel,
        grid=(pl.cdiv(M, bm),),
        in_specs=in_specs,
        out_specs=out_specs[0] if single else out_specs,
        out_shape=out_shape[0] if single else out_shape,
        compiler_params=pltpu.CompilerParams(
            dimension_semantics=("parallel",),
            vmem_limit_bytes=_VMEM_LIMIT),
    )(*row_inputs, *consts)


def pallas_linear_t(x, wT, b_row, act=None, in_dtype=jnp.float32):
    """x: (M, K); wT: (K, N) pre-transposed weight; b_row: (1, N)."""
    return _rowwise_call(_make_linear_kernel(act), [x], [wT, b_row], [wT.shape[1]],
                         in_dtype=in_dtype)


def pallas_linear2_t(x1, x2, w1T, w2T, b_row, in_dtype=jnp.float32):
    return _rowwise_call(_linear2_kernel, [x1, x2], [w1T, w2T, b_row], [w1T.shape[1]],
                         in_dtype=in_dtype)


def _batch_blocks(B):
    # Use both TensorCores (v7x) when the batch gives clean multiple-of-8 sub-blocks.
    if B >= 16 and B % 16 == 0:
        return 2
    return 1


def pallas_gru_context(gi_tb, whhT, bhh, mask_tb1):
    """gi_tb: (T,B,3CH) hoisted input projection; returns last valid hidden (B, CH)."""
    T, B, G = gi_tb.shape
    CH = whhT.shape[0]
    args = (gi_tb.astype(jnp.float32), whhT.astype(jnp.float32),
            bhh.astype(jnp.float32), mask_tb1.astype(jnp.float32))
    out_shape = jax.ShapeDtypeStruct((B, CH), jnp.float32)
    nb = _batch_blocks(B)
    # TODO(synk): for very long T on 64-MiB v7x parts, stream gi over time chunks
    # (manual make_async_copy double-buffering) instead of holding (T,B,3CH) resident.
    if nb == 1:
        return pl.pallas_call(
            _gru_kernel, out_shape=out_shape,
            scratch_shapes=[pltpu.VMEM((B, CH), jnp.float32)] * 2,
            compiler_params=pltpu.CompilerParams(vmem_limit_bytes=_VMEM_LIMIT),
        )(*args)
    bb = B // nb
    return pl.pallas_call(
        _gru_kernel,
        grid=(nb,),
        in_specs=[pl.BlockSpec((T, bb, G), lambda i: (0, i, 0)),
                  pl.BlockSpec(whhT.shape, lambda i: (0, 0)),
                  pl.BlockSpec((1, G), lambda i: (0, 0)),
                  pl.BlockSpec((T, bb, 1), lambda i: (0, i, 0))],
        out_specs=pl.BlockSpec((bb, CH), lambda i: (i, 0)),
        out_shape=out_shape,
        scratch_shapes=[pltpu.VMEM((bb, CH), jnp.float32)] * 2,
        compiler_params=pltpu.CompilerParams(
            dimension_semantics=("parallel",),
            vmem_limit_bytes=_VMEM_LIMIT),
    )(*args)


def pallas_bilstm(gx_tb, ctx_g, whh_bd, h0, c0):
    """gx_tb: (T,B,8H) hoisted per-step projections; ctx_g: (B,8H) time-invariant context
    projection (+biases).  Returns (out_fwd, out_bwd), each (T,B,H)."""
    T, B, G8 = gx_tb.shape
    H2 = h0.shape[1]
    H = H2 // 2
    args = (gx_tb.astype(jnp.float32), ctx_g.astype(jnp.float32),
            whh_bd.astype(jnp.float32), h0.astype(jnp.float32), c0.astype(jnp.float32))
    out_shape = (jax.ShapeDtypeStruct((T, B, H), jnp.float32),
                 jax.ShapeDtypeStruct((T, B, H), jnp.float32))
    nb = _batch_blocks(B)
    if nb == 1:
        return pl.pallas_call(
            _bilstm_kernel, out_shape=out_shape,
            scratch_shapes=[pltpu.VMEM((B, H2), jnp.float32)] * 2,
            compiler_params=pltpu.CompilerParams(vmem_limit_bytes=_VMEM_LIMIT),
        )(*args)
    bb = B // nb
    return pl.pallas_call(
        _bilstm_kernel,
        grid=(nb,),
        in_specs=[pl.BlockSpec((T, bb, G8), lambda i: (0, i, 0)),
                  pl.BlockSpec((bb, G8), lambda i: (i, 0)),
                  pl.BlockSpec(whh_bd.shape, lambda i: (0, 0)),
                  pl.BlockSpec((bb, H2), lambda i: (i, 0)),
                  pl.BlockSpec((bb, H2), lambda i: (i, 0))],
        out_specs=(pl.BlockSpec((T, bb, H), lambda i: (0, i, 0)),
                   pl.BlockSpec((T, bb, H), lambda i: (0, i, 0))),
        out_shape=out_shape,
        scratch_shapes=[pltpu.VMEM((bb, H2), jnp.float32)] * 2,
        compiler_params=pltpu.CompilerParams(
            dimension_semantics=("parallel",),
            vmem_limit_bytes=_VMEM_LIMIT),
    )(*args)


# ------------------------ Bayesian-layer helpers (glue) ------------------------

def sample_bayes_params(key, layer, n=1):
    kw, kb = jax.random.split(key)
    sw = jax.nn.softplus(layer['w_rho'])        # overflow-safe (perf-review correctness note)
    sb = jax.nn.softplus(layer['b_rho'])
    if n == 1:
        w = layer['w_mu'] + sw * jax.random.normal(kw, layer['w_mu'].shape, jnp.float32)
        b = layer['b_mu'] + sb * jax.random.normal(kb, layer['b_mu'].shape, jnp.float32)
    else:
        w = layer['w_mu'] + sw * jax.random.normal(kw, (n,) + layer['w_mu'].shape, jnp.float32)
        b = layer['b_mu'] + sb * jax.random.normal(kb, (n,) + layer['b_mu'].shape, jnp.float32)
    return w, b


def _log_gauss(x, mu, sigma):
    return -0.5 * jnp.log(2.0 * jnp.pi) - jnp.log(sigma) - 0.5 * ((x - mu) / sigma) ** 2


def bayes_kl(layer, w, b):
    sw = jax.nn.softplus(layer['w_rho'])
    sb = jax.nn.softplus(layer['b_rho'])
    log_q = jnp.sum(_log_gauss(w, layer['w_mu'], sw)) + jnp.sum(_log_gauss(b, layer['b_mu'], sb))

    def log_prior(x):
        p1 = jnp.exp(_log_gauss(x, 0.0, PRIOR_S1))
        p2 = jnp.exp(_log_gauss(x, 0.0, PRIOR_S2))
        return jnp.sum(jnp.log(PRIOR_PI * p1 + (1.0 - PRIOR_PI) * p2 + 1e-30))

    return log_q - (log_prior(w) + log_prior(b))


# ------------------------------- parameters -------------------------------

def init_params(key, V, H, CH, FH):
    keys = iter(jax.random.split(key, 64))

    def uni(shape, bound):
        return jax.random.uniform(next(keys), shape, jnp.float32, -bound, bound)

    def bayes(out_f, in_f):
        return dict(
            w_mu=0.1 * jax.random.normal(next(keys), (out_f, in_f), jnp.float32),
            w_rho=jnp.full((out_f, in_f), -7.0, jnp.float32),
            b_mu=0.1 * jax.random.normal(next(keys), (out_f,), jnp.float32),
            b_rho=jnp.full((out_f,), -7.0, jnp.float32),
        )

    def linear(out_f, in_f):
        bnd = 1.0 / math.sqrt(in_f)
        return dict(w=uni((out_f, in_f), bnd), b=uni((out_f,), bnd))

    p = {}
    p['context_mlp_bayes'] = bayes(2 * CH, 3 * V + 1)
    p['context_mlp_lin'] = linear(CH, 2 * CH)

    bnd = 1.0 / math.sqrt(CH)
    p['gru'] = dict(w_ih=uni((3 * CH, 2 * V), bnd), w_hh=uni((3 * CH, CH), bnd),
                    b_ih=uni((3 * CH,), bnd), b_hh=uni((3 * CH,), bnd))

    p['initial_hidden'] = linear(2 * H, 2 * CH)

    D = 2 * V + 2 * CH
    bnd = 1.0 / math.sqrt(H)
    p['lstm_f'] = dict(w_ih=uni((4 * H, D), bnd), w_hh=uni((4 * H, H), bnd),
                       b_ih=uni((4 * H,), bnd), b_hh=uni((4 * H,), bnd))
    p['lstm_b'] = dict(w_ih=uni((4 * H, D), bnd), w_hh=uni((4 * H, H), bnd),
                       b_ih=uni((4 * H,), bnd), b_hh=uni((4 * H,), bnd))

    bnd = 1.0 / math.sqrt(V)
    p['decay'] = dict(W=uni((V, V), bnd), b=uni((V,), bnd))

    p['recurrent_impute'] = bayes(V, 2 * H)

    p['feat_W'] = uni((V, FH, V), bnd)
    p['feat_b'] = uni((V, FH), bnd)
    m = jnp.ones((V, FH, V), jnp.float32)
    idx = jnp.arange(V)
    m = m.at[idx, :, idx].set(0.0)
    p['feat_m'] = m
    p['feat_bayes'] = bayes(FH, FH)
    p['feat_lin'] = linear(1, FH)

    p['fuse'] = bayes(V, 2 * V)
    return p


def precompute_static(params, V, H, CH, FH, sample_nbr):
    """Param-only weight rearrangements (hoisted out of the per-forward path)."""
    S_pad = _round_up(sample_nbr, 8)
    st = {'S_pad': S_pad}
    # temporal decay (diagonal-masked linear)
    Wd = params['decay']['W'] * jnp.eye(V, dtype=jnp.float32)
    st['decay_wT'] = jnp.transpose(Wd)
    st['decay_b_row'] = params['decay']['b'].reshape(1, V)
    # context MLP second layer
    st['ctx_lin_wT'] = jnp.transpose(params['context_mlp_lin']['w'])
    st['ctx_lin_b_row'] = params['context_mlp_lin']['b'].reshape(1, -1)
    # context GRU
    g = params['gru']
    st['gru_wiT_x'] = jnp.transpose(g['w_ih'][:, :V])
    st['gru_wiT_d'] = jnp.transpose(g['w_ih'][:, V:])
    st['gru_bih_row'] = g['b_ih'].reshape(1, -1)
    st['gru_whhT'] = jnp.transpose(g['w_hh'])
    st['gru_bhh_row'] = g['b_hh'].reshape(1, -1)
    # initial hidden
    st['init_wT'] = jnp.transpose(params['initial_hidden']['w'])
    st['init_b_row'] = params['initial_hidden']['b'].reshape(1, -1)
    # BiLSTM: stacked fwd|bwd input projections, split by input group
    lf, lb = params['lstm_f'], params['lstm_b']
    w_ih_both = jnp.concatenate([lf['w_ih'], lb['w_ih']], axis=0)              # (8H, D)
    b_both = jnp.concatenate([lf['b_ih'] + lf['b_hh'], lb['b_ih'] + lb['b_hh']])
    st['lstm_wxT'] = jnp.transpose(w_ih_both[:, :V])                           # x_complement part
    st['lstm_wmT'] = jnp.transpose(w_ih_both[:, V:2 * V])                      # masks part
    st['lstm_wcT'] = jnp.transpose(w_ih_both[:, 2 * V:])                       # context part
    st['lstm_b_row'] = b_both.reshape(1, -1)
    st['lstm_zero_row'] = jnp.zeros((1, 8 * H), jnp.float32)
    whh_bd = jnp.zeros((2 * H, 8 * H), jnp.float32)
    whh_bd = whh_bd.at[:H, :4 * H].set(jnp.transpose(lf['w_hh']))
    whh_bd = whh_bd.at[H:, 4 * H:].set(jnp.transpose(lb['w_hh']))
    st['lstm_whh_bd'] = whh_bd
    # per-feature masked regression + projection krons
    Wm = (params['feat_W'] * params['feat_m']).reshape(V * FH, V)
    st['feat_WmT'] = jnp.transpose(Wm)
    st['feat_b_row'] = params['feat_b'].reshape(1, V * FH)
    w_lin = params['feat_lin']['w'][0]
    b_lin = params['feat_lin']['b'][0]
    st['feat_projV'] = jnp.kron(jnp.eye(V, dtype=jnp.float32), w_lin.reshape(FH, 1))
    st['feat_blin_rowV'] = jnp.full((1, V), b_lin, jnp.float32)
    st['feat_projS'] = jnp.kron(jnp.eye(S_pad, dtype=jnp.float32), w_lin.reshape(FH, 1))
    st['feat_blin_rowS'] = jnp.full((1, S_pad), b_lin, jnp.float32)
    return st


def _pad_out_rows(w, b, n_pad):
    n = w.shape[0]
    if n_pad == n:
        return w, b
    return (jnp.concatenate([w, jnp.zeros((n_pad - n, w.shape[1]), w.dtype)], axis=0),
            jnp.concatenate([b, jnp.zeros((n_pad - n,), b.dtype)], axis=0))


# ------------------------------- CATSI forward -------------------------------

def catsi_forward(params, static, data, key, V, H, CH, FH, sample_nbr=30):
    lengths = data['lengths'].astype(jnp.float32)             # (B,)
    values = data['values'].astype(jnp.float32)               # (B,T,V)
    masks = data['masks'].astype(jnp.float32)
    deltas = data['deltas'].astype(jnp.float32)
    B, T, _ = values.shape
    S = sample_nbr
    S_pad = static['S_pad']
    M = B * T

    t_idx = jnp.arange(1, T + 1, dtype=jnp.float32)
    padding_2d = (t_idx[None, :] <= lengths[:, None]).astype(jnp.float32)       # (B,T)
    padding_masks = jnp.broadcast_to(padding_2d[:, :, None], (B, T, V))

    # NOTE: mirrors the reference module (statistics include zero-filled missing/padded slots;
    # (masks_sum_t - 1) == 0 would NaN exactly as the reference would).
    masks_sum_t = masks.sum(axis=1)
    data_means = values.sum(axis=1) / masks_sum_t
    data_variance = ((values - data_means[:, None, :]) ** 2).sum(axis=1) / (masks_sum_t - 1.0)
    data_stdev = jnp.sqrt(data_variance)
    data_missing_rate = 1.0 - masks_sum_t / padding_masks.sum(axis=1)
    data_stats = jnp.concatenate(
        [lengths[:, None], data_means, data_stdev, data_missing_rate], axis=1)  # (B, 3V+1)

    eps = 1e-5
    min_vals = data['min_vals'].astype(jnp.float32)            # (B,1,V)
    max_vals = data['max_vals'].astype(jnp.float32)
    mmn = max_vals - min_vals + eps
    nv = (values - min_vals) / mmn
    nmeans = (data_means - min_vals[:, 0, :]) / mmn[:, 0, :]

    x_prime = jnp.concatenate([nv[:, :1, :], nv[:, :-1, :]], axis=1)

    # --- Bayesian weight draws (same order/count as the reference path) ---
    keys = iter(jax.random.split(key, 16))
    w_ctx, b_ctx = sample_bayes_params(next(keys), params['context_mlp_bayes'])
    w_ri1, b_ri1 = sample_bayes_params(next(keys), params['recurrent_impute'])
    w_fb1, b_fb1 = sample_bayes_params(next(keys), params['feat_bayes'])
    w_fu1, b_fu1 = sample_bayes_params(next(keys), params['fuse'])
    w_riS, b_riS = sample_bayes_params(next(keys), params['recurrent_impute'], n=S)
    w_fbS, b_fbS = sample_bayes_params(next(keys), params['feat_bayes'], n=S)
    w_fu2, b_fu2 = sample_bayes_params(next(keys), params['fuse'])

    # flat (B*T, ·) row views, (b, t) major
    deltas_f = deltas.reshape(M, V)
    xprime_f = x_prime.reshape(M, V)
    masks_f = masks.reshape(M, V)
    nv_f = nv.reshape(M, V)
    nmeans_f = jnp.broadcast_to(nmeans[:, None, :], (B, T, V)).reshape(M, V)
    pad_f = padding_2d.reshape(M, 1)

    # --- fused: temporal decay + decayed estimate + complement (one kernel, two outputs) ---
    gamma_f, x_comp_f = _rowwise_call(
        _decay_complement_kernel,
        [deltas_f, xprime_f, nmeans_f, masks_f, nv_f, pad_f],
        [static['decay_wT'], static['decay_b_row']],
        [V, V])
    x_complement = x_comp_f.reshape(B, T, V)

    # --- context MLP: Bayesian linear -> relu -> linear fused in ONE kernel ---
    context_mlp = _rowwise_call(
        _mlp2_kernel, [data_stats],
        [jnp.transpose(w_ctx), b_ctx.reshape(1, -1),
         static['ctx_lin_wT'], static['ctx_lin_b_row']],
        [CH], hidden_width=2 * CH)

    # --- context GRU: input projection hoisted into one split-input matmul ---
    xc_tm = jnp.transpose(x_complement, (1, 0, 2)).reshape(T * B, V)
    deltas_tm = jnp.transpose(deltas, (1, 0, 2)).reshape(T * B, V)
    gi = pallas_linear2_t(xc_tm, deltas_tm,
                          static['gru_wiT_x'], static['gru_wiT_d'], static['gru_bih_row'],
                          in_dtype=_MATMUL_INPUT_DTYPE).reshape(T, B, 3 * CH)
    mask_tb1 = jnp.transpose(padding_2d)[:, :, None]                      # (T,B,1)
    context_rnn = pallas_gru_context(gi, static['gru_whhT'], static['gru_bhh_row'], mask_tb1)

    context_vec = jnp.concatenate([context_mlp, context_rnn], axis=1)     # (B, 2CH)
    h0 = pallas_linear_t(context_vec, static['init_wT'], static['init_b_row'])  # (B,2H)=[fwd|bwd]
    c0 = jnp.tanh(h0)

    # --- bidirectional LSTM: per-step x/mask projections hoisted into ONE matmul; the
    #     context-vector projection computed ONCE per batch row and added inside the kernel ---
    masks_tm = jnp.transpose(masks, (1, 0, 2)).reshape(T * B, V)
    gx = pallas_linear2_t(xc_tm, masks_tm,
                          static['lstm_wxT'], static['lstm_wmT'], static['lstm_zero_row'],
                          in_dtype=_MATMUL_INPUT_DTYPE).reshape(T, B, 8 * H)
    ctx_g = pallas_linear_t(context_vec, static['lstm_wcT'], static['lstm_b_row'])   # (B, 8H)
    out_f, out_b = pallas_bilstm(gx, ctx_g, static['lstm_whh_bd'], h0, c0)           # (T,B,H) x2
    hf_flat = jnp.transpose(out_f, (1, 0, 2)).reshape(M, H)
    hb_flat = jnp.transpose(out_b, (1, 0, 2)).reshape(M, H)

    # --- recurrent imputation: deterministic draw + S ELBO samples stacked along output
    #     lanes, padded (S+1)*V -> 128-lane multiple so every store is an unmasked vst.
    #     Sample axis stays trailing downstream. ---
    n_ri = (S + 1) * V
    n_ri_pad = _round_up(n_ri, 128)
    w_ri_all = jnp.concatenate(
        [w_ri1, jnp.transpose(w_riS, (1, 0, 2)).reshape(V * S, 2 * H)], axis=0)
    b_ri_all = jnp.concatenate([b_ri1, jnp.transpose(b_riS).reshape(V * S)], axis=0)
    w_ri_all, b_ri_all = _pad_out_rows(w_ri_all, b_ri_all, n_ri_pad)
    out_all = pallas_linear2_t(
        hf_flat, hb_flat,
        jnp.transpose(w_ri_all[:, :H]), jnp.transpose(w_ri_all[:, H:]),
        b_ri_all.reshape(1, -1), in_dtype=_MATMUL_INPUT_DTYPE)            # (B*T, n_ri_pad)
    rnn_imp_f = out_all[:, :V]
    rnn_imp = rnn_imp_f.reshape(B, T, V)
    out_rnn = out_all[:, V:V + V * S].reshape(B, T, V, S)                 # sample axis last

    # --- feature imputation: masked per-feature linear -> relu -> Bayesian FH block -> relu
    #     -> FH->1 projection, fused into ONE kernel via block-diagonal weights ---
    wb_bd = jnp.kron(jnp.eye(V, dtype=jnp.float32), jnp.transpose(w_fb1))     # (V*FH, V*FH)
    bb_row = jnp.tile(b_fb1, V).reshape(1, V * FH)
    feat_imp_f = _rowwise_call(
        _feat_chain_kernel, [x_comp_f],
        [static['feat_WmT'], static['feat_b_row'], wb_bd, bb_row,
         static['feat_projV'], static['feat_blin_rowV']],
        [V], hidden_width=2 * V * FH)
    feat_imp = feat_imp_f.reshape(B, T, V)

    # --- fuse imputations + final imputation in ONE kernel (beta & beta2 share inputs) ---
    w_fu_all = jnp.concatenate([w_fu1, w_fu2], axis=0)                    # (2V, 2V)
    b_fu_row = jnp.concatenate([b_fu1, b_fu2]).reshape(1, 2 * V)
    final_f, fusion_f, beta2_f = _rowwise_call(
        _fuse_impute_kernel,
        [gamma_f, masks_f, feat_imp_f, rnn_imp_f, nv_f],
        [jnp.transpose(w_fu_all[:, :V]), jnp.transpose(w_fu_all[:, V:]), b_fu_row],
        [V, V, V])
    final_imp = final_f.reshape(B, T, V)
    imp_fusion = fusion_f.reshape(B, T, V)
    beta2 = beta2_f.reshape(B, T, V)

    labels = nv * masks

    # --- sample_elbo: recurrent_impute (already stacked into out_all, sample axis last) ---
    mse_rnn = jnp.sum((out_rnn - labels[..., None]) ** 2, axis=(0, 1, 2))      # (S,)
    kl_rnn = jax.vmap(lambda ww, bb: bayes_kl(params['recurrent_impute'], ww, bb))(w_riS, b_riS)
    rnn_loss = jnp.mean(mse_rnn + kl_rnn * (1.0 / B))

    # --- sample_elbo: feature_impute: S samples stacked along lanes (padded S -> S_pad) with
    #     the FH->1 projection folded in, so z_s (B*T*V x S*FH) never touches HBM ---
    hid2 = _rowwise_call(
        _masked_linear_relu_kernel, [feat_imp_f, masks_f],
        [static['feat_WmT'], static['feat_b_row']],
        [V * FH], in_dtype=_MATMUL_INPUT_DTYPE).reshape(M * V, FH)
    w_fbS_pad = jnp.concatenate(
        [w_fbS, jnp.zeros((S_pad - S, FH, FH), jnp.float32)], axis=0)
    b_fbS_pad = jnp.concatenate(
        [b_fbS, jnp.zeros((S_pad - S, FH), jnp.float32)], axis=0)
    w_stack = jnp.transpose(w_fbS_pad, (2, 0, 1)).reshape(FH, S_pad * FH)
    b_stack = b_fbS_pad.reshape(1, S_pad * FH)
    out_feat_pad = _rowwise_call(
        _relu_mlp_proj_kernel, [hid2],
        [w_stack, b_stack, static['feat_projS'], static['feat_blin_rowS']],
        [S_pad], hidden_width=S_pad * FH,
        in_dtype=_MATMUL_INPUT_DTYPE)                                      # (B*T*V, S_pad)
    out_feat = out_feat_pad[:, :S].reshape(B, T, V, S)                     # sample axis last
    mse_feat = jnp.sum((out_feat - labels[..., None]) ** 2, axis=(0, 1, 2))
    kl_feat = jax.vmap(lambda ww, bb: bayes_kl(params['feat_bayes'], ww, bb))(w_fbS, b_fbS)
    feat_loss = jnp.mean(mse_feat + kl_feat * (1.0 / B))

    fusion_loss = jnp.sum((imp_fusion * masks - labels) ** 2)
    total_loss = rnn_loss + feat_loss + fusion_loss

    # --- eval-only branch (self.training == False): sample axis kept trailing (lane-dense),
    #     quantiles over the last axis, outputSet emitted without any (S, ...) transposes ---
    meanValue = beta2[..., None] * out_feat + (1.0 - beta2[..., None]) * out_rnn   # (B,T,V,S)
    finalLower = jnp.quantile(meanValue, 0.05, axis=-1)
    finalUpper = jnp.quantile(meanValue, 0.95, axis=-1)
    finalUpper = masks * nv + (1.0 - masks) * finalUpper
    finalLower = masks * nv + (1.0 - masks) * finalLower
    outputSet = meanValue                                                  # (B,T,V,S)

    def rescale(x):
        return jnp.where(padding_masks == 1.0, x * mmn + min_vals, padding_masks)

    msum = masks.sum()
    out = {
        'loss': total_loss / msum,
        'verbose_loss': [('rnn_loss', rnn_loss / msum, msum),
                         ('feat_loss', feat_loss / msum, msum),
                         ('fusion_loss', fusion_loss / msum, msum)],
        'loss_count': msum,
        'imputations': rescale(final_imp),
        'feat_imp': rescale(feat_imp),
        'hist_imp': rescale(rnn_imp),
        'finalUpper': rescale(finalUpper),
        'finalLower': rescale(finalLower),
        'outputSet': outputSet,
    }
    # TODO(synk): training-mode branch (eval_masks / normalized_evals losses) not exercised here.
    return out


# ----------------------------------- main -----------------------------------

if __name__ == "__main__":
    V, H, CH, FH = 4, 16, 8, 32       # num_vars, hidden_size, context_hidden, feat hidden
    B, T = 2, 8
    S = 30

    key = jax.random.PRNGKey(0)
    k1, k2, k3, kparam, kfwd = jax.random.split(key, 5)

    values = jax.random.normal(k1, (B, T, V), jnp.float32)
    masks = (jax.random.uniform(k2, (B, T, V)) < 0.7).astype(jnp.float32)
    masks = masks.at[:, :3, :].set(1.0)   # guarantee >= 3 observations per (b, v)
    deltas = jax.random.uniform(k3, (B, T, V), jnp.float32, 0.0, 2.0)
    min_vals = values.min(axis=1, keepdims=True)
    max_vals = values.max(axis=1, keepdims=True)

    data = dict(lengths=jnp.array([8.0, 5.0], jnp.float32),
                values=values, masks=masks, deltas=deltas,
                min_vals=min_vals, max_vals=max_vals)

    params = init_params(kparam, V, H, CH, FH)
    static = precompute_static(params, V, H, CH, FH, S)     # hoisted, reusable across forwards
    out = catsi_forward(params, static, data, kfwd, V, H, CH, FH, sample_nbr=S)

    for name in ['loss', 'loss_count', 'imputations', 'feat_imp', 'hist_imp',
                 'finalUpper', 'finalLower', 'outputSet']:
        jax.block_until_ready(out[name])
    for _, v, c in out['verbose_loss']:
        jax.block_until_ready(v)
        jax.block_until_ready(c)

    print("KERNEL_OK")
</pallas_src>

<mosaic_0001>
module attributes {stable_mosaic.version = 11 : i64} {
  func.func @_decay_complement_kernel(%arg0: memref<16x4xf32, #tpu.memory_space<vmem>>, %arg1: memref<16x4xf32, #tpu.memory_space<vmem>>, %arg2: memref<16x4xf32, #tpu.memory_space<vmem>>, %arg3: memref<16x4xf32, #tpu.memory_space<vmem>>, %arg4: memref<16x4xf32, #tpu.memory_space<vmem>>, %arg5: memref<16x1xf32, #tpu.memory_space<vmem>>, %arg6: memref<4x4xf32, #tpu.memory_space<vmem>>, %arg7: memref<1x4xf32, #tpu.memory_space<vmem>>, %arg8: memref<16x4xf32, #tpu.memory_space<vmem>>, %arg9: memref<16x4xf32, #tpu.memory_space<vmem>>) attributes {dimension_semantics = [], scalar_prefetch = 0 : i64, scratch_operands = 0 : i64, tpu.core_type = #tpu.core_type<tc>} {
    %c0 = arith.constant 0 : index
    %c0_0 = arith.constant 0 : index
    %0 = vector.load %arg0[%c0, %c0_0] : memref<16x4xf32, #tpu.memory_space<vmem>>, vector<16x4xf32>
    %c0_1 = arith.constant 0 : index
    %c0_2 = arith.constant 0 : index
    %1 = vector.load %arg6[%c0_1, %c0_2] : memref<4x4xf32, #tpu.memory_space<vmem>>, vector<4x4xf32>
    %cst = arith.constant dense<0.000000e+00> : vector<16x4xf32>
    %2 = tpu.matmul %0, %1, %cst {dimension_numbers = #tpu.dot_dimension_numbers<[1], [0], [0], [1], [0, 0, 1, 1], [], []>} : vector<16x4xf32>, vector<4x4xf32>, vector<16x4xf32> -> vector<16x4xf32>
    %c0_3 = arith.constant 0 : index
    %c0_4 = arith.constant 0 : index
    %3 = vector.load %arg7[%c0_3, %c0_4] : memref<1x4xf32, #tpu.memory_space<vmem>>, vector<1x4xf32>
    %4 = vector.broadcast %3 : vector<1x4xf32> to vector<16x4xf32>
    %5 = arith.addf %2, %4 : vector<16x4xf32>
    %cst_5 = arith.constant 0.000000e+00 : f32
    %6 = vector.broadcast %cst_5 : f32 to vector<16x4xf32>
    %7 = arith.maximumf %5, %6 : vector<16x4xf32>
    %cst_6 = arith.constant 0.000000e+00 : f32
    %8 = vector.broadcast %cst_6 : f32 to vector<16x4xf32>
    %9 = arith.subf %8, %7 : vector<16x4xf32>
    %10 = math.exp %9 : vector<16x4xf32>
    %c0_7 = arith.constant 0 : index
    %c0_8 = arith.constant 0 : index
    %11 = vector.load %arg1[%c0_7, %c0_8] : memref<16x4xf32, #tpu.memory_space<vmem>>, vector<16x4xf32>
    %12 = arith.mulf %10, %11 : vector<16x4xf32>
    %cst_9 = arith.constant 1.000000e+00 : f32
    %13 = vector.broadcast %cst_9 : f32 to vector<16x4xf32>
    %14 = arith.subf %13, %10 : vector<16x4xf32>
    %c0_10 = arith.constant 0 : index
    %c0_11 = arith.constant 0 : index
    %15 = vector.load %arg2[%c0_10, %c0_11] : memref<16x4xf32, #tpu.memory_space<vmem>>, vector<16x4xf32>
    %16 = arith.mulf %14, %15 : vector<16x4xf32>
    %17 = arith.addf %12, %16 : vector<16x4xf32>
    %c0_12 = arith.constant 0 : index
    %c0_13 = arith.constant 0 : index
    %18 = vector.load %arg3[%c0_12, %c0_13] : memref<16x4xf32, #tpu.memory_space<vmem>>, vector<16x4xf32>
    %c0_14 = arith.constant 0 : index
    %c0_15 = arith.constant 0 : index
    %19 = vector.load %arg8[%c0_14, %c0_15] : memref<16x4xf32, #tpu.memory_space<vmem>>, vector<16x4xf32>
    tpu.vector_store %arg8[%c0_14, %c0_15], %10 {strides = array<i32>} : memref<16x4xf32, #tpu.memory_space<vmem>>, vector<16x4xf32>,
    %c0_16 = arith.constant 0 : index
    %c0_17 = arith.constant 0 : index
    %20 = vector.load %arg4[%c0_16, %c0_17] : memref<16x4xf32, #tpu.memory_space<vmem>>, vector<16x4xf32>
    %21 = arith.mulf %18, %20 : vector<16x4xf32>
    %cst_18 = arith.constant 1.000000e+00 : f32
    %22 = vector.broadcast %cst_18 : f32 to vector<16x4xf32>
    %23 = arith.subf %22, %18 : vector<16x4xf32>
    %24 = arith.mulf %23, %17 : vector<16x4xf32>
    %25 = arith.addf %21, %24 : vector<16x4xf32>
    %c0_19 = arith.constant 0 : index
    %c0_20 = arith.constant 0 : index
    %26 = vector.load %arg5[%c0_19, %c0_20] : memref<16x1xf32, #tpu.memory_space<vmem>>, vector<16x1xf32>
    %27 = vector.broadcast %26 : vector<16x1xf32> to vector<16x4xf32>
    %28 = arith.mulf %25, %27 : vector<16x4xf32>
    %c0_21 = arith.constant 0 : index
    %c0_22 = arith.constant 0 : index
    %29 = vector.load %arg9[%c0_21, %c0_22] : memref<16x4xf32, #tpu.memory_space<vmem>>, vector<16x4xf32>
    tpu.vector_store %arg9[%c0_21, %c0_22], %28 {strides = array<i32>} : memref<16x4xf32, #tpu.memory_space<vmem>>, vector<16x4xf32>,
    return
  }
}

</mosaic_0001>

<llo_original>
// kernel: tpu_custom_call.1
$region0: #{tpu_custom_call.1}
  #allocation0 [shape = 'u32[]', space=smem, size = 0x4, offset = 0x4, fixed_abs, tag = 'smem constant byte address 0x4 - core index']
  #allocation1 [shape = 'u32[144,128]{1,0:T(1,128)}', space=vmem, size = 0x12000, scoped, tag = 'internal scratch']
  %s0 = inlined_call_operand.vmem [shape: f32[16,4], index: 0, kind: input, shape index: {}]
  %s1 = inlined_call_operand.vmem [shape: f32[16,4], index: 1, kind: input, shape index: {}]
  %s2 = inlined_call_operand.vmem [shape: f32[16,4], index: 2, kind: input, shape index: {}]
  %s3 = inlined_call_operand.vmem [shape: f32[16,4], index: 3, kind: input, shape index: {}]
  %s4 = inlined_call_operand.vmem [shape: f32[16,4], index: 4, kind: input, shape index: {}]
  %s5 = inlined_call_operand.vmem [shape: f32[16,1], index: 5, kind: input, shape index: {}]
  %s6 = inlined_call_operand.vmem [shape: f32[4,4], index: 6, kind: input, shape index: {}]
  %s7 = inlined_call_operand.vmem [shape: f32[1,4], index: 7, kind: input, shape index: {}]
  %s8 = inlined_call_operand.vmem [shape: f32[16,4], index: 8, kind: output, shape index: {0}]
  %s9 = inlined_call_operand.vmem [shape: f32[16,4], index: 9, kind: output, shape index: {1}]
  %10 = xla_tuple %s8, %s9
  %s11 = sld [smem:[#allocation0]]
  $region50: #{tpu_custom_call.1} parent=0
    _
  %s13 = ssub.s32 1, %s11
  %s14 = scalar_select 0, %s13, %s11
  // Predicated region
  $region2: #{tpu_custom_call.1} parent=0 // pred_check
    _
  $region3: #{tpu_custom_call.1} parent=0 // pred_check_branch
    %16 = sbr.rel (0) target = $region5
  $region4: #{tpu_custom_call.1} parent=0 // pred_region
    _
  $region5: #{tpu_custom_call.1} parent=0 // pred_fallthru
    _
  // Predicated region
  $region6: #{tpu_custom_call.1} parent=0 // pred_check
    _
  $region7: #{tpu_custom_call.1} parent=0 // pred_check_branch
    %18 = sbr.rel (0) target = $region9
  $region8: #{tpu_custom_call.1} parent=0 // pred_region
    _
  $region9: #{tpu_custom_call.1} parent=0 // pred_fallthru
    _
  // Predicated region
  $region10: #{tpu_custom_call.1} parent=0 // pred_check
    _
  $region11: #{tpu_custom_call.1} parent=0 // pred_check_branch
    %20 = sbr.rel (0) target = $region13
  $region12: #{tpu_custom_call.1} parent=0 // pred_region
    _
  $region13: #{tpu_custom_call.1} parent=0 // pred_fallthru
    _
  // Predicated region
  $region14: #{tpu_custom_call.1} parent=0 // pred_check
    _
  $region15: #{tpu_custom_call.1} parent=0 // pred_check_branch
    %22 = sbr.rel (0) target = $region17
  $region16: #{tpu_custom_call.1} parent=0 // pred_region
    _
  $region17: #{tpu_custom_call.1} parent=0 // pred_fallthru
    _
  // Predicated region
  $region18: #{tpu_custom_call.1} parent=0 // pred_check
    _
  $region19: #{tpu_custom_call.1} parent=0 // pred_check_branch
    %24 = sbr.rel (0) target = $region21
  $region20: #{tpu_custom_call.1} parent=0 // pred_region
    _
  $region21: #{tpu_custom_call.1} parent=0 // pred_fallthru
    _
  // Predicated region
  $region22: #{tpu_custom_call.1} parent=0 // pred_check
    _
  $region23: #{tpu_custom_call.1} parent=0 // pred_check_branch
    %26 = sbr.rel (0) target = $region25
  $region24: #{tpu_custom_call.1} parent=0 // pred_region
    _
  $region25: #{tpu_custom_call.1} parent=0 // pred_fallthru
    _
  // Predicated region
  $region26: #{tpu_custom_call.1} parent=0 // pred_check
    _
  $region27: #{tpu_custom_call.1} parent=0 // pred_check_branch
    %28 = sbr.rel (0) target = $region29
  $region28: #{tpu_custom_call.1} parent=0 // pred_region
    _
  $region29: #{tpu_custom_call.1} parent=0 // pred_fallthru
    _
  // Predicated region
  $region30: #{tpu_custom_call.1} parent=0 // pred_check
    _
  $region31: #{tpu_custom_call.1} parent=0 // pred_check_branch
    %30 = sbr.rel (0) target = $region33
  $region32: #{tpu_custom_call.1} parent=0 // pred_region
    _
  $region33: #{tpu_custom_call.1} parent=0 // pred_fallthru
    _
  %v31 = vld [vmem:[%s0] sm:$0xff]
  %v32 = vld [vmem:[%s0 + $0x8] sm:$0xff]
  %v33 = vld [vmem:[%s6] sm:$0xf]
  %v34 = vld [vmem:[%s7] sm:$0x1]
  %v36 = vlaneseq
  %v37 = vshrl.u32 %v36, 7
  %v38 = vsub.s32 0, %v37
  %v39 = vrot.slane %v34, %v38
  %vm41 = vcmask 31744
  %v43 = vsel %vm41, %v31, 0
  %v46 = vsel %vm41, %v32, 0
  %vm48 = vcmask 1043456
  %v50 = vsel %vm48, %v33, 0
  %52 = vmatprep.subr.mxu0 0.0
  %53 = vmatpush1.msra.mxu0 %v50
  %54 = vmatprep.subr.mxu0 0.0
  %55 = vmatpush1.msra.mxu0 0.0
  %56 = vmatprep.subr.mxu0 0.0
  %57 = vmatpush1.msra.mxu0 0.0
  %58 = vmatprep.subr.mxu0 0.0
  %59 = vmatpush1.msra.mxu0 0.0
  %60 = vmatprep.subr.mxu0 0.0
  %61 = vmatpush1.msra.mxu0 0.0
  %62 = vmatprep.subr.mxu0 0.0
  %63 = vmatpush1.msra.mxu0 0.0
  %64 = vmatprep.subr.mxu0 0.0
  %65 = vmatpush1.msra.mxu0 0.0
  %66 = vmatprep.subr.mxu0 0.0
  %67 = vmatpush1.msra.mxu0 0.0
  %68 = vmatprep.subr.mxu0 0.0
  %69 = vmatpush1.msra.mxu0 0.0
  %70 = vmatprep.subr.mxu0 0.0
  %71 = vmatpush1.msra.mxu0 0.0
  %72 = vmatprep.subr.mxu0 0.0
  %73 = vmatpush1.msra.mxu0 0.0
  %74 = vmatprep.subr.mxu0 0.0
  %75 = vmatpush1.msra.mxu0 0.0
  %76 = vmatprep.subr.mxu0 0.0
  %77 = vmatpush1.msra.mxu0 0.0
  %78 = vmatprep.subr.mxu0 0.0
  %79 = vmatpush1.msra.mxu0 0.0
  %80 = vmatprep.subr.mxu0 0.0
  %81 = vmatpush1.msra.mxu0 0.0
  %82 = vmatprep.subr.mxu0 0.0
  %83 = vmatpush1.msra.mxu0 0.0
  %84 = vmatprep.subr.mxu0 0.0
  %85 = vmatpush1.msra.mxu0 0.0
  %86 = vmatprep.subr.mxu0 0.0
  %87 = vmatpush1.msra.mxu0 0.0
  %88 = vmatprep.subr.mxu0 0.0
  %89 = vmatpush1.msra.mxu0 0.0
  %90 = vmatprep.subr.mxu0 0.0
  %91 = vmatpush1.msra.mxu0 0.0
  %92 = vmatprep.subr.mxu0 0.0
  %93 = vmatpush1.msra.mxu0 0.0
  %94 = vmatprep.subr.mxu0 0.0
  %95 = vmatpush1.msra.mxu0 0.0
  %96 = vmatprep.subr.mxu0 0.0
  %97 = vmatpush1.msra.mxu0 0.0
  %98 = vmatprep.subr.mxu0 0.0
  %99 = vmatpush1.msra.mxu0 0.0
  %100 = vmatprep.subr.mxu0 0.0
  %101 = vmatpush1.msra.mxu0 0.0
  %102 = vmatprep.subr.mxu0 0.0
  %103 = vmatpush1.msra.mxu0 0.0
  %104 = vmatprep.subr.mxu0 0.0
  %105 = vmatpush1.msra.mxu0 0.0
  %106 = vmatprep.subr.mxu0 0.0
  %107 = vmatpush1.msra.mxu0 0.0
  %108 = vmatprep.subr.mxu0 0.0
  %109 = vmatpush1.msra.mxu0 0.0
  %110 = vmatprep.subr.mxu0 0.0
  %111 = vmatpush1.msra.mxu0 0.0
  %112 = vmatprep.subr.mxu0 0.0
  %113 = vmatpush1.msra.mxu0 0.0
  %114 = vmatprep.subr.mxu0 0.0
  %115 = vmatpush1.msra.mxu0 0.0
  %116 = vmatprep.mubr.f32.mxu0 0.0
  %117 = vmatmul.mubr.f32.gmra.mrb[0].mxu0 %v43
  %v118 = vpop.f32.mrb[0].mxu0
  %v119 = vadd.f32 %v39, %v118
  %v120 = vpop.f32.mrb[0].mxu0
  %121 = vmatprep.mubr.f32.mxu0 0.0
  %122 = vmatmul.mubr.f32.gmra.mrb[0].mxu0 %v46
  %v123 = vpop.f32.mrb[0].mxu0
  %v124 = vadd.f32 %v39, %v123
  %v125 = vpop.f32.mrb[0].mxu0
  %126 = vdwg.mxu0
  %v127 = vmax.f32 %v119, 0.0
  %v128 = vmax.f32 %v124, 0.0
  %v129 = vsub.f32 0.0, %v127
  %v130 = vsub.f32 0.0, %v128
  %v131 = vmul.f32 %v129, 1.442695
  %v132 = vpow.pop %v131
  %v133 = vmul.f32 %v130, 1.442695
  %v134 = vpow.pop %v133
  %v135 = vld [vmem:[%s1] sm:$0xff]
  %v136 = vld [vmem:[%s1 + $0x8] sm:$0xff]
  %v137 = vmul.f32 %v132, %v135
  %v138 = vmul.f32 %v134, %v136
  %v139 = vsub.f32 1.0, %v132
  %v140 = vsub.f32 1.0, %v134
  %v141 = vld [vmem:[%s2] sm:$0xff]
  %v142 = vld [vmem:[%s2 + $0x8] sm:$0xff]
  %v143 = vmul.f32 %v139, %v141
  %v144 = vmul.f32 %v140, %v142
  %v145 = vadd.f32 %v137, %v143
  %v146 = vadd.f32 %v138, %v144
  %v147 = vld [vmem:[%s3] sm:$0xff]
  %v148 = vld [vmem:[%s3 + $0x8] sm:$0xff]
  %149 = vst.msk [vmem:[%s8] sm:$0xff] %vm41, %v132
  %150 = vst.msk [vmem:[%s8 + $0x8] sm:$0xff] %vm41, %v134
  %v151 = vld [vmem:[%s4] sm:$0xff]
  %v152 = vld [vmem:[%s4 + $0x8] sm:$0xff]
  %v153 = vmul.f32 %v147, %v151
  %v154 = vmul.f32 %v148, %v152
  %v155 = vsub.f32 1.0, %v147
  %v156 = vsub.f32 1.0, %v148
  %v157 = vmul.f32 %v155, %v145
  %v158 = vmul.f32 %v156, %v146
  %v159 = vadd.f32 %v153, %v157
  %v160 = vadd.f32 %v154, %v158
  %v161 = vld [vmem:[%s5] sm:$0xff]
  %v162 = vld [vmem:[%s5 + $0x8] sm:$0xff]
  %164 = vset.pattern.permute.xlu0 0
  %165 = vperm.xlu0 %164, %v161
  %v166 = vpop.permute.xlu0 %165
  %169 = vset.pattern.permute.xlu0 0
  %170 = vperm.xlu0 %169, %v162
  %v171 = vpop.permute.xlu0 %170
  %v173 = vmul.f32 %v159, %v166
  %v174 = vmul.f32 %v160, %v171
  %175 = vst.msk [vmem:[%s9] sm:$0xff] %vm41, %v173
  %176 = vst.msk [vmem:[%s9 + $0x8] sm:$0xff] %vm41, %v174
  // Predicated region
  $region34: #{tpu_custom_call.1} parent=0 // pred_check
    _
  $region35: #{tpu_custom_call.1} parent=0 // pred_check_branch
    %178 = sbr.rel (0) target = $region37
  $region36: #{tpu_custom_call.1} parent=0 // pred_region
    _
  $region37: #{tpu_custom_call.1} parent=0 // pred_fallthru
    _
  // Predicated region
  $region38: #{tpu_custom_call.1} parent=0 // pred_check
    _
  $region39: #{tpu_custom_call.1} parent=0 // pred_check_branch
    %180 = sbr.rel (0) target = $region41
  $region40: #{tpu_custom_call.1} parent=0 // pred_region
    _
  $region41: #{tpu_custom_call.1} parent=0 // pred_fallthru
    _
  // Predicated region
  $region42: #{tpu_custom_call.1} parent=0 // pred_check
    _
  $region43: #{tpu_custom_call.1} parent=0 // pred_check_branch
    %182 = sbr.rel (0) target = $region45
  $region44: #{tpu_custom_call.1} parent=0 // pred_region
    _
  $region45: #{tpu_custom_call.1} parent=0 // pred_fallthru
    _
  // Predicated region
  $region46: #{tpu_custom_call.1} parent=0 // pred_check
    _
  $region47: #{tpu_custom_call.1} parent=0 // pred_check_branch
    %184 = sbr.rel (0) target = $region49
  $region48: #{tpu_custom_call.1} parent=0 // pred_region
    _
  $region49: #{tpu_custom_call.1} parent=0 // pred_fallthru
    _

</llo_original>
